<compile_context>
chip_gen: v6e
topology: v6e:2x2x1
jax: 0.10.0
libtpu: 0.0.40
codegen_flags: <defaults>
</compile_context>

<pallas_src>
import functools

import jax
import jax.numpy as jnp
from jax import lax
from jax.experimental import pallas as pl
from jax.experimental.pallas import tpu as pltpu

_LANES = 128
_SUBLANES = 8
_SUB_ELEMS = _SUBLANES * _LANES  # 1024 elements per streamed (8,128) vreg


def _masked_mse_kernel(pred_ref, target_ref, sq_ref, cnt_ref, *,
                       block_rows, steps_per_chunk, total_elems):
    c = pl.program_id(0)   # parallel chunk axis (sharded across TCs on v7x)
    i = pl.program_id(1)   # arbitrary (reduction) step axis

    @pl.when(i == 0)
    def _init():
        sq_ref[...] = jnp.zeros_like(sq_ref)
        cnt_ref[...] = jnp.zeros_like(cnt_ref)

    # Flat element index of this block's first element, from the *intended*
    # (unclamped) block index. The input index_map clamps the block index so no
    # DMA ever starts past the array; any duplicated / edge-padded / tail-padded
    # data is discarded here by `flat < total_elems`.
    step = c * steps_per_chunk + i
    block_base = step * (block_rows * _LANES)  # int32 scalar
    # TODO(synk): switch the flat-index mask to a (row, lane) pair of int32
    # compares if tensors ever exceed 2^31 elements.

    local_off = (lax.broadcasted_iota(jnp.int32, (_SUBLANES, _LANES), 0) * _LANES
                 + lax.broadcasted_iota(jnp.int32, (_SUBLANES, _LANES), 1))

    n_sub = block_rows // _SUBLANES

    def body(r, carry):
        acc_sq, acc_cnt = carry
        r0 = pl.multiple_of(r * _SUBLANES, _SUBLANES)
        t = target_ref[pl.ds(r0, _SUBLANES), :].astype(jnp.float32)
        p = pred_ref[pl.ds(r0, _SUBLANES), :].astype(jnp.float32)
        flat = block_base + r * _SUB_ELEMS + local_off
        valid = (t > 0.0) & (flat < total_elems)
        d = jnp.where(valid, t - p, 0.0)
        return acc_sq + d * d, acc_cnt + valid.astype(jnp.float32)

    zero = jnp.zeros((_SUBLANES, _LANES), jnp.float32)
    acc_sq, acc_cnt = lax.fori_loop(0, n_sub, body, (zero, zero))

    # Per-chunk resident accumulators (output blocks revisited across the
    # "arbitrary" i axis only).
    sq_ref[...] += acc_sq
    cnt_ref[...] += acc_cnt


def masked_mse_loss(pred, target, *, max_block_rows=8192, num_chunks=2):
    """pred, target: same-shape arrays. Returns scalar masked MSE (target > 0)."""
    assert pred.shape == target.shape, "inconsistent dimensions"

    total = 1
    for s in pred.shape:
        total *= s
    assert total > 0, "empty input"

    # Dtype-aware row alignment: 8 (f32) / 16 (bf16) / 32 (int8/fp8) so the
    # BlockSpec always satisfies the per-dtype minimum tile.
    itemsize = min(jnp.dtype(pred.dtype).itemsize, jnp.dtype(target.dtype).itemsize)
    row_align = _SUBLANES * max(1, 4 // int(itemsize))

    rows = pl.cdiv(total, _LANES)
    rows_p = ((rows + row_align - 1) // row_align) * row_align
    padded_total = rows_p * _LANES

    def _prep(x):
        x = x.reshape(-1)
        if padded_total != total:
            # Rare path: tiny tail pad only (pad target=0 -> masked; the
            # flat-index mask covers it as well). Common NN shapes skip this.
            x = jnp.pad(x, (0, padded_total - total))
        return x.reshape(rows_p, _LANES)

    p2 = _prep(pred)
    t2 = _prep(target)

    if rows_p <= max_block_rows:
        tb = rows_p                                   # single full-array block
    else:
        tb = max(row_align, (max_block_rows // row_align) * row_align)

    total_steps = pl.cdiv(rows_p, tb)
    nc = max(1, min(num_chunks, total_steps))
    spc = pl.cdiv(total_steps, nc)

    def in_map(c, i):
        # Clamp so fully-out-of-range blocks (when nc*spc > total_steps) never
        # DMA past the end; the kernel masks the duplicated data out.
        return (jnp.minimum(c * spc + i, total_steps - 1), 0)

    kernel = functools.partial(
        _masked_mse_kernel,
        block_rows=tb, steps_per_chunk=spc, total_elems=total)

    in_block_bytes = tb * _LANES * (p2.dtype.itemsize + t2.dtype.itemsize)

    sq_part, cnt_part = pl.pallas_call(
        kernel,
        out_shape=(jax.ShapeDtypeStruct((nc, _SUBLANES, _LANES), jnp.float32),
                   jax.ShapeDtypeStruct((nc, _SUBLANES, _LANES), jnp.float32)),
        grid_spec=pltpu.PrefetchScalarGridSpec(
            num_scalar_prefetch=0,
            grid=(nc, spc),
            in_specs=[
                pl.BlockSpec((tb, _LANES), in_map),
                pl.BlockSpec((tb, _LANES), in_map),
            ],
            out_specs=[
                pl.BlockSpec((None, _SUBLANES, _LANES), lambda c, i: (c, 0, 0)),
                pl.BlockSpec((None, _SUBLANES, _LANES), lambda c, i: (c, 0, 0)),
            ],
        ),
        compiler_params=pltpu.CompilerParams(
            # Chunk axis shards across TensorCores (v7x megacore); step axis is
            # the reduction into the resident per-chunk output block.
            dimension_semantics=("parallel", "arbitrary"),
            # Double-buffered inputs + 50% headroom; default tb=8192 (f32) ->
            # 16 MiB of input buffers, comfortably inside v7x's 64 MiB VMEM.
            vmem_limit_bytes=int(max(32 * 1024 * 1024, 3 * in_block_bytes)),
        ),
        cost_estimate=pl.CostEstimate(
            flops=5 * total,
            transcendentals=0,
            bytes_accessed=total * (p2.dtype.itemsize + t2.dtype.itemsize),
        ),
    )(p2, t2)

    # Tiny cross-chunk combine (nc * 1024 elems) and the single divide.
    # NaN when no element of target is > 0 (matches torch .mean() on empty).
    return jnp.sum(sq_part) / jnp.sum(cnt_part)


def _reference(pred, target):
    mask = target > 0
    diff = jnp.where(mask, (target - pred).astype(jnp.float32), 0.0)
    return jnp.sum(diff * diff) / jnp.sum(mask.astype(jnp.float32))


if __name__ == "__main__":
    key = jax.random.PRNGKey(0)
    k1, k2, k3, k4, k5, k6 = jax.random.split(key, 6)

    # Case 1: small, lane-aligned (2*4*16*16 = 2048 elems -> zero-copy path).
    pred1 = jax.random.normal(k1, (2, 4, 16, 16), dtype=jnp.float32)
    targ1 = jax.random.normal(k2, (2, 4, 16, 16), dtype=jnp.float32)
    out1 = masked_mse_loss(pred1, targ1)
    jax.block_until_ready(out1)
    ref1 = _reference(pred1, targ1)
    assert jnp.allclose(out1, ref1, rtol=1e-5, atol=1e-6), (out1, ref1)

    # Case 2: multi-chunk / multi-step grid with a ragged last block and one
    # clamped (fully masked) grid point: rows=40, tb=16 -> 3 real blocks over
    # a (2 chunks x 2 steps) grid.
    pred2 = jax.random.normal(k3, (1, 40, 128), dtype=jnp.float32)
    targ2 = jax.random.normal(k4, (1, 40, 128), dtype=jnp.float32)
    out2 = masked_mse_loss(pred2, targ2, max_block_rows=16)
    jax.block_until_ready(out2)
    ref2 = _reference(pred2, targ2)
    assert jnp.allclose(out2, ref2, rtol=1e-5, atol=1e-6), (out2, ref2)

    # Case 3: element count not a multiple of 128 -> tiny tail-pad path.
    pred3 = jax.random.normal(k5, (3, 5, 7, 11), dtype=jnp.float32)
    targ3 = jax.random.normal(k6, (3, 5, 7, 11), dtype=jnp.float32)
    out3 = masked_mse_loss(pred3, targ3)
    jax.block_until_ready(out3)
    ref3 = _reference(pred3, targ3)
    assert jnp.allclose(out3, ref3, rtol=1e-5, atol=1e-6), (out3, ref3)

    print("KERNEL_OK")
</pallas_src>

<mosaic_0001>
module attributes {stable_mosaic.version = 11 : i64} {
  func.func @_masked_mse_kernel(%arg0: i32, %arg1: i32, %arg2: memref<16x128xf32, #tpu.memory_space<vmem>>, %arg3: memref<16x128xf32, #tpu.memory_space<vmem>>, %arg4: memref<1x8x128xf32, #tpu.memory_space<vmem>>, %arg5: memref<1x8x128xf32, #tpu.memory_space<vmem>>) attributes {dimension_semantics = [#tpu.dimension_semantics<parallel>, #tpu.dimension_semantics<arbitrary>], iteration_bounds = array<i64: 1, 1>, scalar_prefetch = 0 : i64, scratch_operands = 0 : i64, tpu.core_type = #tpu.core_type<tc>, window_params = [{transform_indices = @transform_0, window_bounds = array<i64: 16, 128>}, {transform_indices = @transform_1, window_bounds = array<i64: 16, 128>}, {transform_indices = @transform_2, window_bounds = array<i64: 1, 8, 128>}, {transform_indices = @transform_3, window_bounds = array<i64: 1, 8, 128>}]} {
    %c0_i32 = arith.constant 0 : i32
    %0 = arith.cmpi eq, %arg1, %c0_i32 : i32
    %1 = arith.extui %0 : i1 to i32
    %c0_i32_0 = arith.constant 0 : i32
    %2 = arith.cmpi ne, %1, %c0_i32_0 : i32
    scf.if %2 {
      %cst_15 = arith.constant 0.000000e+00 : f32
      %26 = vector.broadcast %cst_15 : f32 to vector<8x128xf32>
      %c0_16 = arith.constant 0 : index
      %c0_17 = arith.constant 0 : index
      %c0_18 = arith.constant 0 : index
      %27 = vector.load %arg4[%c0_16, %c0_17, %c0_18] : memref<1x8x128xf32, #tpu.memory_space<vmem>>, vector<1x8x128xf32>
      %28 = vector.shape_cast %27 : vector<1x8x128xf32> to vector<8x128xf32>
      %29 = vector.shape_cast %26 : vector<8x128xf32> to vector<1x8x128xf32>
      tpu.vector_store %arg4[%c0_16, %c0_17, %c0_18], %29 {strides = array<i32>} : memref<1x8x128xf32, #tpu.memory_space<vmem>>, vector<1x8x128xf32>,
      %cst_19 = arith.constant 0.000000e+00 : f32
      %30 = vector.broadcast %cst_19 : f32 to vector<8x128xf32>
      %c0_20 = arith.constant 0 : index
      %c0_21 = arith.constant 0 : index
      %c0_22 = arith.constant 0 : index
      %31 = vector.load %arg5[%c0_20, %c0_21, %c0_22] : memref<1x8x128xf32, #tpu.memory_space<vmem>>, vector<1x8x128xf32>
      %32 = vector.shape_cast %31 : vector<1x8x128xf32> to vector<8x128xf32>
      %33 = vector.shape_cast %30 : vector<8x128xf32> to vector<1x8x128xf32>
      tpu.vector_store %arg5[%c0_20, %c0_21, %c0_22], %33 {strides = array<i32>} : memref<1x8x128xf32, #tpu.memory_space<vmem>>, vector<1x8x128xf32>,
    } else {
    }
    %c1_i32 = arith.constant 1 : i32
    %3 = arith.muli %arg0, %c1_i32 : i32
    %4 = arith.addi %3, %arg1 : i32
    %c2048_i32 = arith.constant 2048 : i32
    %5 = arith.muli %4, %c2048_i32 : i32
    %6 = tpu.iota {dimensions = array<i32: 0>} : vector<8x128xi32>
    %c128_i32 = arith.constant 128 : i32
    %7 = vector.broadcast %c128_i32 : i32 to vector<8x128xi32>
    %8 = arith.muli %6, %7 : vector<8x128xi32>
    %9 = tpu.iota {dimensions = array<i32: 1>} : vector<8x128xi32>
    %10 = arith.addi %8, %9 : vector<8x128xi32>
    %cst = arith.constant 0.000000e+00 : f32
    %11 = vector.broadcast %cst : f32 to vector<8x128xf32>
    %c0_i32_1 = arith.constant 0 : i32
    %c2_i32 = arith.constant 2 : i32
    %12 = arith.addi %c0_i32_1, %c2_i32 : i32
    %c1_i32_2 = arith.constant 1 : i32
    %13:2 = scf.for %arg6 = %c0_i32_1 to %12 step %c1_i32_2 iter_args(%arg7 = %11, %arg8 = %11) -> (vector<8x128xf32>, vector<8x128xf32>)  : i32 {
      %c8_i32 = arith.constant 8 : i32
      %26 = arith.muli %arg6, %c8_i32 : i32
      %27 = tpu.assume_multiple %26, 8 : i32
      %28 = arith.index_cast %27 : i32 to index
      %c0_15 = arith.constant 0 : index
      %29 = vector.load %arg3[%28, %c0_15] : memref<16x128xf32, #tpu.memory_space<vmem>>, vector<8x128xf32>
      %30 = arith.index_cast %27 : i32 to index
      %c0_16 = arith.constant 0 : index
      %31 = vector.load %arg2[%30, %c0_16] : memref<16x128xf32, #tpu.memory_space<vmem>>, vector<8x128xf32>
      %c1024_i32 = arith.constant 1024 : i32
      %32 = arith.muli %arg6, %c1024_i32 : i32
      %33 = arith.addi %5, %32 : i32
      %34 = vector.broadcast %33 : i32 to vector<8x128xi32>
      %35 = arith.addi %34, %10 : vector<8x128xi32>
      %cst_17 = arith.constant 0.000000e+00 : f32
      %36 = vector.broadcast %cst_17 : f32 to vector<8x128xf32>
      %37 = arith.cmpf ogt, %29, %36 : vector<8x128xf32>
      %c2048_i32_18 = arith.constant 2048 : i32
      %38 = vector.broadcast %c2048_i32_18 : i32 to vector<8x128xi32>
      %39 = arith.cmpi slt, %35, %38 : vector<8x128xi32>
      %40 = arith.andi %37, %39 : vector<8x128xi1>
      %41 = arith.subf %29, %31 : vector<8x128xf32>
      %cst_19 = arith.constant 0.000000e+00 : f32
      %42 = vector.broadcast %cst_19 : f32 to vector<8x128xf32>
      %43 = arith.select %40, %41, %42 : vector<8x128xi1>, vector<8x128xf32>
      %44 = arith.mulf %43, %43 : vector<8x128xf32>
      %45 = arith.addf %arg7, %44 : vector<8x128xf32>
      %46 = arith.extui %40 : vector<8x128xi1> to vector<8x128xi32>
      %47 = arith.sitofp %46 : vector<8x128xi32> to vector<8x128xf32>
      %48 = arith.addf %arg8, %47 : vector<8x128xf32>
      scf.yield %45, %48 : vector<8x128xf32>, vector<8x128xf32>
    }
    %c2_i32_3 = arith.constant 2 : i32
    %c0 = arith.constant 0 : index
    %c0_4 = arith.constant 0 : index
    %c0_5 = arith.constant 0 : index
    %14 = vector.load %arg4[%c0, %c0_4, %c0_5] : memref<1x8x128xf32, #tpu.memory_space<vmem>>, vector<1x8x128xf32>
    %15 = vector.shape_cast %14 : vector<1x8x128xf32> to vector<8x128xf32>
    %16 = arith.addf %15, %13#0 : vector<8x128xf32>
    %c0_6 = arith.constant 0 : index
    %c0_7 = arith.constant 0 : index
    %c0_8 = arith.constant 0 : index
    %17 = vector.load %arg4[%c0_6, %c0_7, %c0_8] : memref<1x8x128xf32, #tpu.memory_space<vmem>>, vector<1x8x128xf32>
    %18 = vector.shape_cast %17 : vector<1x8x128xf32> to vector<8x128xf32>
    %19 = vector.shape_cast %16 : vector<8x128xf32> to vector<1x8x128xf32>
    tpu.vector_store %arg4[%c0_6, %c0_7, %c0_8], %19 {strides = array<i32>} : memref<1x8x128xf32, #tpu.memory_space<vmem>>, vector<1x8x128xf32>,
    %c0_9 = arith.constant 0 : index
    %c0_10 = arith.constant 0 : index
    %c0_11 = arith.constant 0 : index
    %20 = vector.load %arg5[%c0_9, %c0_10, %c0_11] : memref<1x8x128xf32, #tpu.memory_space<vmem>>, vector<1x8x128xf32>
    %21 = vector.shape_cast %20 : vector<1x8x128xf32> to vector<8x128xf32>
    %22 = arith.addf %21, %13#1 : vector<8x128xf32>
    %c0_12 = arith.constant 0 : index
    %c0_13 = arith.constant 0 : index
    %c0_14 = arith.constant 0 : index
    %23 = vector.load %arg5[%c0_12, %c0_13, %c0_14] : memref<1x8x128xf32, #tpu.memory_space<vmem>>, vector<1x8x128xf32>
    %24 = vector.shape_cast %23 : vector<1x8x128xf32> to vector<8x128xf32>
    %25 = vector.shape_cast %22 : vector<8x128xf32> to vector<1x8x128xf32>
    tpu.vector_store %arg5[%c0_12, %c0_13, %c0_14], %25 {strides = array<i32>} : memref<1x8x128xf32, #tpu.memory_space<vmem>>, vector<1x8x128xf32>,
    return
  }
  func.func @transform_0(%arg0: i32, %arg1: i32) -> (i32, i32) {
    %c1_i32 = arith.constant 1 : i32
    %0 = arith.muli %arg0, %c1_i32 : i32
    %1 = arith.addi %0, %arg1 : i32
    %c0_i32 = arith.constant 0 : i32
    %2 = arith.minsi %1, %c0_i32 : i32
    %c0_i32_0 = arith.constant 0 : i32
    %c0_i32_1 = arith.constant 0 : i32
    return %2, %c0_i32_0 : i32, i32
  }
  func.func @transform_1(%arg0: i32, %arg1: i32) -> (i32, i32) {
    %c1_i32 = arith.constant 1 : i32
    %0 = arith.muli %arg0, %c1_i32 : i32
    %1 = arith.addi %0, %arg1 : i32
    %c0_i32 = arith.constant 0 : i32
    %2 = arith.minsi %1, %c0_i32 : i32
    %c0_i32_0 = arith.constant 0 : i32
    %c0_i32_1 = arith.constant 0 : i32
    return %2, %c0_i32_0 : i32, i32
  }
  func.func @transform_2(%arg0: i32, %arg1: i32) -> (i32, i32, i32) {
    %c0_i32 = arith.constant 0 : i32
    %c0_i32_0 = arith.constant 0 : i32
    %c0_i32_1 = arith.constant 0 : i32
    return %arg0, %c0_i32, %c0_i32_0 : i32, i32, i32
  }
  func.func @transform_3(%arg0: i32, %arg1: i32) -> (i32, i32, i32) {
    %c0_i32 = arith.constant 0 : i32
    %c0_i32_0 = arith.constant 0 : i32
    %c0_i32_1 = arith.constant 0 : i32
    return %arg0, %c0_i32, %c0_i32_0 : i32, i32, i32
  }
}

</mosaic_0001>

<llo_original>
// kernel: tpu_custom_call.1
$region0: #{tpu_custom_call.1}
  #allocation0 [shape = 'u32[]', space=smem, size = 0x4, offset = 0x4, fixed_abs, tag = 'smem constant byte address 0x4 - core index']
  #allocation1 [shape = 'u32[144,128]{1,0:T(1,128)}', space=vmem, size = 0x12000, scoped, tag = 'internal scratch']
  %s0 = inlined_call_operand.hbm [shape: f32[16,128], index: 0, kind: input, shape index: {}]
  %s1 = inlined_call_operand.hbm [shape: f32[16,128], index: 1, kind: input, shape index: {}]
  %s2 = inlined_call_operand.hbm [shape: f32[1,8,128], index: 2, kind: output, shape index: {0}]
  %s3 = inlined_call_operand.hbm [shape: f32[1,8,128], index: 3, kind: output, shape index: {1}]
  %4 = xla_tuple %s2, %s3
  %s5 = sld [smem:[#allocation0]]
  $region45: #{tpu_custom_call.1} parent=0
    _
  %s7 = ssub.s32 1, %s5
  %s8 = scalar_select 0, %s7, %s5
  $region1: #{tpu_custom_call.1} parent=0
    #allocation2 [shape = 'u8[8192]{0}', space=vmem, size = 0x2000, scoped, tag = 'input window, operand 0, single buffered']
    #allocation3 [shape = 's32[1]{0}', space=sflag, size = 0x4, scoped, tag = 'scoped memory for tpu_custom_call.1']
    #allocation4 [shape = 's32[1]{0}', space=sflag, size = 0x4, scoped, tag = 'scoped memory for tpu_custom_call.1']
    #allocation5 [shape = 'u8[8192]{0}', space=vmem, size = 0x2000, scoped, tag = 'input window, operand 1, single buffered']
    #allocation6 [shape = 's32[1]{0}', space=sflag, size = 0x4, scoped, tag = 'scoped memory for tpu_custom_call.1']
    #allocation7 [shape = 'u8[4096]{0}', space=vmem, size = 0x1000, scoped, tag = 'output window, operand 0, single buffered']
    #allocation8 [shape = 'u8[4096]{0}', space=vmem, size = 0x1000, scoped, tag = 'output window, operand 1, single buffered']
    #allocation9 [shape = 's32[1]{0}', space=sflag, size = 0x4, scoped, tag = 'scoped memory for tpu_custom_call.1']
    %9 = vsyncpa [#allocation3], 0
    %10 = vsyncpa [#allocation6], 0
    %11 = vsyncpa [#allocation4], 0
    %12 = vsyncpa [#allocation9], 0
    // Predicated region
    $region2: #{tpu_custom_call.1} parent=1 // pred_check
      _
    $region3: #{tpu_custom_call.1} parent=1 // pred_check_branch
      %14 = sbr.rel (0) target = $region5
    $region4: #{tpu_custom_call.1} parent=1 // pred_region
      %s15 = sadd.s32 0, 0
      %p16 = scmp.lt.s32.totalorder %s15, 0
      %s17 = scalar_select %p16, %s15, 0
      %s18 = smul.u32 2, %s17
      %s20 = ssub.s32 256, 256
      %21 = vsyncadd [#allocation3], %s20
      %s22 = smul.addr %s18, 128
      %s23 = scalar_lea.hbm %s0, %s22
      %s24 = sshll.u32 [#allocation2], 4
      %s25 = int_to_ptr.vmem [resolvable:$true] %s24
      %30 = dma.hbm_to_vmem [thread:$0]  %s23, 256, %s25, [#allocation3], 128, 128, 8
    $region5: #{tpu_custom_call.1} parent=1 // pred_fallthru
      _
    // Predicated region
    $region6: #{tpu_custom_call.1} parent=1 // pred_check
      _
    $region7: #{tpu_custom_call.1} parent=1 // pred_check_branch
      %32 = sbr.rel (0) target = $region9
    $region8: #{tpu_custom_call.1} parent=1 // pred_region
      %s33 = sadd.s32 0, 0
      %p34 = scmp.lt.s32.totalorder %s33, 0
      %s35 = scalar_select %p34, %s33, 0
      %s36 = smul.u32 2, %s35
      %s38 = ssub.s32 256, 256
      %39 = vsyncadd [#allocation6], %s38
      %s40 = smul.addr %s36, 128
      %s41 = scalar_lea.hbm %s1, %s40
      %s42 = sshll.u32 [#allocation5], 4
      %s43 = int_to_ptr.vmem [resolvable:$true] %s42
      %48 = dma.hbm_to_vmem [thread:$0]  %s41, 256, %s43, [#allocation6], 128, 128, 8
    $region9: #{tpu_custom_call.1} parent=1 // pred_fallthru
      _
    // Predicated region
    $region10: #{tpu_custom_call.1} parent=1 // pred_check
      _
    $region11: #{tpu_custom_call.1} parent=1 // pred_check_branch
      %50 = sbr.rel (0) target = $region13
    $region12: #{tpu_custom_call.1} parent=1 // pred_region
      %51 = dma.done [#allocation3], 256
    $region13: #{tpu_custom_call.1} parent=1 // pred_fallthru
      _
    // Predicated region
    $region14: #{tpu_custom_call.1} parent=1 // pred_check
      _
    $region15: #{tpu_custom_call.1} parent=1 // pred_check_branch
      %53 = sbr.rel (0) target = $region17
    $region16: #{tpu_custom_call.1} parent=1 // pred_region
      %54 = dma.done [#allocation6], 256
    $region17: #{tpu_custom_call.1} parent=1 // pred_fallthru
      _
    %s55 = sadd.s32 0, 0
    %p56 = scmp.lt.s32.totalorder %s55, 0
    %s57 = scalar_select %p56, %s55, 0
    %s58 = smul.u32 2, %s57
    %s59 = sadd.s32 0, 0
    %p60 = scmp.lt.s32.totalorder %s59, 0
    %s61 = scalar_select %p60, %s59, 0
    %s62 = smul.u32 2, %s61
    %p63 = scmp.eq.s32.totalorder 0, 0
    // Predicated region
    $region18: #{tpu_custom_call.1} parent=1 // pred_check
      %p64 = pneg %p63
    $region19: #{tpu_custom_call.1} parent=1 // pred_check_branch
      %66 = sbr.rel (%p64) target = $region21
    $region20: #{tpu_custom_call.1} parent=1 // pred_region
      %67 = vst [vmem:[#allocation7] sm:$0xff] 0.0
      %68 = vst [vmem:[#allocation8] sm:$0xff] 0.0
    $region21: #{tpu_custom_call.1} parent=1 // pred_fallthru
      _
    %s69 = sadd.s32 0, 0
    %s70 = smul.u32 %s69, 2048
    %v71 = vlaneseq
    %v72 = vshrl.u32 %v71, 7
    %v73 = vmul.u32 %v72, 128
    %v74 = vlaneseq
    %v75 = vand.u32 %v74, 127
    %v76 = vadd.s32 %v73, %v75
    loop: start=0, step=1, limit=2
    $region22: #{tpu_custom_call.1} parent=1 // loop_pre_header
      _
    $region23: #{tpu_custom_call.1} parent=1 // loop_header
      %s78 = sphi 0, %s82
      %p79 = scmp.ge.s32.totalorder %s78, 2
      %v83 = vphi 0.0, %v100
      %v84 = vphi 0.0, %v103
    $region24: #{tpu_custom_call.1} parent=1 // loop_header_branch
      %81 = sbr.rel (%p79) target = $region28
    $region25: #{tpu_custom_call.1} parent=1 // loop_body
      %s85 = smul.u32 %s78, 8
      %s86 = scalar_lea.vmem [#allocation5], %s85
      %v87 = vld [vmem:[%s86] sm:$0xff]
      %s88 = scalar_lea.vmem [#allocation2], %s85
      %v89 = vld [vmem:[%s88] sm:$0xff]
      %s90 = smul.u32 %s78, 1024
      %s91 = sadd.s32 %s70, %s90
      %v92 = vstv %s91
      %v93 = vadd.s32 %v92, %v76
      %vm94 = vcmp.gt.f32.partialorder %v87, 0.0
      %vm95 = vcmp.lt.s32.totalorder %v93, 2048
      %vm96 = vmand %vm94, %vm95
      %v97 = vsub.f32 %v87, %v89
      %v98 = vsel %vm96, %v97, 0.0
      %v99 = vmul.f32 %v98, %v98
      %v100 = vadd.f32 %v83, %v99
      %v101 = vsel %vm96, 1, 0
      %v102 = vcvt.s32.f32 %v101
      %v103 = vadd.f32 %v84, %v102
    $region26: #{tpu_custom_call.1} parent=1 // loop_footer
      %s82 = sadd.s32 1, %s78
    $region27: #{tpu_custom_call.1} parent=1 // loop_footer_branch
      %77 = sbr.rel target = $region23
    $region28: #{tpu_custom_call.1} parent=1 // loop_exit
      _
    %v104 = vld [vmem:[#allocation7] sm:$0xff]
    %v105 = vadd.f32 %v104, %v83
    %106 = vst [vmem:[#allocation7] sm:$0xff] %v105
    %v107 = vld [vmem:[#allocation8] sm:$0xff]
    %v108 = vadd.f32 %v107, %v84
    %109 = vst [vmem:[#allocation8] sm:$0xff] %v108
    // Predicated region
    $region29: #{tpu_custom_call.1} parent=1 // pred_check
      _
    $region30: #{tpu_custom_call.1} parent=1 // pred_check_branch
      %111 = sbr.rel (0) target = $region32
    $region31: #{tpu_custom_call.1} parent=1 // pred_region
      %s113 = ssub.s32 128, 128
      %114 = vsyncadd [#allocation4], %s113
      %s116 = sshll.u32 [#allocation7], 4
      %s117 = int_to_ptr.vmem [resolvable:$true] %s116
      %119 = dma.vmem_to_hbm [thread:$0]  %s117, 128, %s2, [#allocation4]
    $region32: #{tpu_custom_call.1} parent=1 // pred_fallthru
      _
    // Predicated region
    $region33: #{tpu_custom_call.1} parent=1 // pred_check
      _
    $region34: #{tpu_custom_call.1} parent=1 // pred_check_branch
      %121 = sbr.rel (0) target = $region36
    $region35: #{tpu_custom_call.1} parent=1 // pred_region
      %s123 = ssub.s32 128, 128
      %124 = vsyncadd [#allocation9], %s123
      %s126 = sshll.u32 [#allocation8], 4
      %s127 = int_to_ptr.vmem [resolvable:$true] %s126
      %129 = dma.vmem_to_hbm [thread:$0]  %s127, 128, %s3, [#allocation9]
    $region36: #{tpu_custom_call.1} parent=1 // pred_fallthru
      _
    // Predicated region
    $region37: #{tpu_custom_call.1} parent=1 // pred_check
      _
    $region38: #{tpu_custom_call.1} parent=1 // pred_check_branch
      %131 = sbr.rel (0) target = $region40
    $region39: #{tpu_custom_call.1} parent=1 // pred_region
      %132 = dma.done [#allocation4], 128
    $region40: #{tpu_custom_call.1} parent=1 // pred_fallthru
      _
    // Predicated region
    $region41: #{tpu_custom_call.1} parent=1 // pred_check
      _
    $region42: #{tpu_custom_call.1} parent=1 // pred_check_branch
      %134 = sbr.rel (0) target = $region44
    $region43: #{tpu_custom_call.1} parent=1 // pred_region
      %135 = dma.done [#allocation9], 128
    $region44: #{tpu_custom_call.1} parent=1 // pred_fallthru
      _
    %136 = vsyncpa [#allocation3], 1
    %137 = vsyncpa [#allocation6], 1
    %138 = vsyncpa [#allocation4], 1
    %139 = vsyncpa [#allocation9], 1

</llo_original>
